<compile_context>
chip_gen: v7x
topology: tpu7x:2x2x1
jax: 0.10.0
libtpu: 0.0.40
codegen_flags: <defaults>
</compile_context>

<pallas_src>
import functools

import jax
import jax.numpy as jnp
import numpy as np
from jax.experimental import pallas as pl
from jax.experimental.pallas import tpu as pltpu


_TINY_LEVEL_HW = 64          # high-res H*W at/below which plain XLA is used
_VMEM_BUDGETS = None         # (tile_budget_bytes, vmem_limit_bytes), memoized


def _vmem_budgets():
    """Generation-aware VMEM budgets (v5e/v6e: 128 MiB, v7x: 64 MiB per TC)."""
    global _VMEM_BUDGETS
    if _VMEM_BUDGETS is None:
        try:
            cap = int(pltpu.get_tpu_info().vmem_capacity_bytes)
        except Exception:
            cap = 64 * 1024 * 1024            # conservative (v7x-sized) fallback
        _VMEM_BUDGETS = ((cap * 3) // 8,      # double-buffered tile budget
                         (cap * 5) // 8)      # scoped vmem limit
    return _VMEM_BUDGETS


def _pick_row_band(h2, w2, C, itemsize, tile_budget, n_batch):
    """Largest low-res row band whose double-buffered tiles fit the budget."""
    # Bytes per low-res row resident in VMEM (2 buffers each):
    #   x_lo: w2*C, x_hi: 4*w2*C, out: 4*w2*C  ->  18 * w2 * C * itemsize
    per_row = 18 * w2 * C * itemsize
    th = max(1, min(h2, tile_budget // max(per_row, 1)))
    # With batch == 1, keep >= 2 grid steps so both v7x TensorCores get work
    # (costs at most one extra ~0.35us grid step on single-TC v5e/v6e).
    if n_batch == 1 and h2 >= 2:
        th = min(th, -(-h2 // 2))
    return th


def _td_kernel(x_lo_ref, x_hi_ref, w_ref, b_ref, o_ref):
    # x_lo_ref : (th, w2, C)        low-res rows of this band
    # x_hi_ref : (th, 2, w2, 2C)    high-res rows (both row parities); even/odd
    #                               columns packed along the 2C lane dim
    # w_ref    : (C, 2C)            duplicated 1x1-conv weight [w | w]
    # b_ref    : (1, 2C)            duplicated bias [b | b]
    # o_ref    : (th, 2, w2, 2C)
    th, w2, C = x_lo_ref.shape
    C2 = o_ref.shape[-1]
    # One band-level MXU matmul (M = th*w2): amortizes the RHS push/drain and
    # avoids th redundant bias broadcasts.  The duplicated weight makes the
    # matmul output already width-upsampled (nearest 2x along W).
    y = jnp.dot(x_lo_ref[...].reshape(th * w2, C), w_ref[...],
                preferred_element_type=jnp.float32) + b_ref[...]
    y = y.reshape(th, 1, w2, C2)
    # Residual add in f32 against both row parities (nearest 2x along H);
    # single cast to the output dtype.
    o_ref[...] = (x_hi_ref[...].astype(jnp.float32) + y).astype(o_ref.dtype)


@functools.partial(jax.jit, static_argnames=("th", "vmem_limit"))
def _topdown_pair_pallas(x_hi, x_lo, w, b, *, th, vmem_limit):
    N, H, W, C = x_hi.shape
    h2, w2 = H // 2, W // 2

    # Free (row-major split/merge) reshape; no HBM data movement.
    x_hi_r = x_hi.reshape(N, h2, 2, w2, 2 * C)

    # Duplicate the tiny conv weight/bias along the output dim so the matmul
    # directly produces the width-upsampled addend; pin them to the activation
    # dtype so bf16 feature maps keep a bf16 MXU path (accumulation stays f32).
    w = w.astype(x_lo.dtype)
    b = b.astype(x_lo.dtype)
    w_dup = jnp.concatenate([w, w], axis=1)                     # (C, 2C)
    b_dup = jnp.concatenate([b, b], axis=0).reshape(1, 2 * C)   # (1, 2C)

    grid = (N, pl.cdiv(h2, th))

    # NOTE: when C < 64 the 2*C lane dim is below 128 and stores are masked;
    # real FPN channel counts (>= 64) give fully lane-dense stores.
    # TODO(synk): callers that can donate x_hi may add input_output_aliases to
    #             reuse its HBM buffer; omitted because the test re-reads it.
    out_r = pl.pallas_call(
        _td_kernel,
        out_shape=jax.ShapeDtypeStruct((N, h2, 2, w2, 2 * C), x_hi.dtype),
        grid=grid,
        in_specs=[
            pl.BlockSpec((pl.Squeezed(), th, w2, C),
                         lambda n, r: (n, r, 0, 0)),
            pl.BlockSpec((pl.Squeezed(), th, 2, w2, 2 * C),
                         lambda n, r: (n, r, 0, 0, 0)),
            pl.BlockSpec((C, 2 * C), lambda n, r: (0, 0)),
            pl.BlockSpec((1, 2 * C), lambda n, r: (0, 0)),
        ],
        out_specs=pl.BlockSpec((pl.Squeezed(), th, 2, w2, 2 * C),
                               lambda n, r: (n, r, 0, 0, 0)),
        compiler_params=pltpu.CompilerParams(
            dimension_semantics=("parallel", "parallel"),
            vmem_limit_bytes=int(vmem_limit)),
    )(x_lo, x_hi_r, w_dup, b_dup)

    # Free reshape back to NHWC.
    return out_r.reshape(N, H, W, C)


@jax.jit
def _topdown_pair_xla(x_hi, x_lo, w, b):
    # Plain-XLA path for tiny coarse pyramid levels.
    y = jnp.einsum('nhwc,cd->nhwd', x_lo, w.astype(x_lo.dtype),
                   preferred_element_type=jnp.float32) + b.astype(jnp.float32)
    y = jnp.repeat(jnp.repeat(y, 2, axis=1), 2, axis=2)
    return (x_hi.astype(jnp.float32) + y).astype(x_hi.dtype)


def topdown_pair(x_hi, x_lo, w, b):
    """out = x_hi + nearest_upsample_2x(conv1x1(x_lo; w, b)); all NHWC."""
    N, H, W, C = x_hi.shape
    assert H % 2 == 0 and W % 2 == 0, "2x nearest upsample needs even H, W"
    # TODO(synk): arbitrary (non-2x / odd) F.interpolate target sizes are not
    #             covered; the canonical FPN top-down uses exact 2x nearest.
    h2, w2 = H // 2, W // 2
    assert x_lo.shape == (N, h2, w2, C)

    if H * W <= _TINY_LEVEL_HW:
        # Coarse pyramid levels: pallas_call launch overhead dwarfs the work.
        return _topdown_pair_xla(x_hi, x_lo, w, b)

    tile_budget, vmem_limit = _vmem_budgets()
    itemsize = jnp.dtype(x_hi.dtype).itemsize
    th = _pick_row_band(h2, w2, C, itemsize, tile_budget, N)
    return _topdown_pair_pallas(x_hi, x_lo, w, b, th=th, vmem_limit=vmem_limit)


def topdown_forward(in_feat_maps, w, b):
    """Pallas version of TopDown.forward (list of NHWC maps)."""
    num_maps = len(in_feat_maps)
    return [topdown_pair(in_feat_maps[i], in_feat_maps[i + 1], w, b)
            for i in range(num_maps - 1)]


def _ref_pair(x_hi, x_lo, w, b):
    y = jnp.einsum('nhwc,cd->nhwd', x_lo, w) + b
    y_up = jnp.repeat(jnp.repeat(y, 2, axis=1), 2, axis=2)
    return x_hi + y_up


if __name__ == "__main__":
    key = jax.random.PRNGKey(0)
    k0, k1, k2, kw, kb, k3, k4 = jax.random.split(key, 7)

    # ---- f32 feature pyramid (NHWC): strides 1x, 2x, 4x -------------------
    N, C = 2, 4
    feats = [
        jax.random.normal(k0, (N, 16, 16, C), jnp.float32),
        jax.random.normal(k1, (N, 8, 8, C), jnp.float32),
        jax.random.normal(k2, (N, 4, 4, C), jnp.float32),
    ]
    # Deterministic synthetic parameters for the 1x1 conv inside `td`.
    w = jax.random.normal(kw, (C, C), jnp.float32) * 0.1
    b = jax.random.normal(kb, (C,), jnp.float32) * 0.1

    outs = topdown_forward(feats, w, b)
    outs = jax.block_until_ready(outs)

    for i, o in enumerate(outs):
        ref = _ref_pair(feats[i], feats[i + 1], w, b)
        np.testing.assert_allclose(np.asarray(o), np.asarray(ref),
                                   rtol=1e-5, atol=1e-5)

    # ---- bf16, batch=1 pair: exercises the N==1 row-band split + bf16 I/O --
    Cb = 8
    xh = jax.random.normal(k3, (1, 16, 16, Cb), jnp.float32)
    xl = jax.random.normal(k4, (1, 8, 8, Cb), jnp.float32)
    wb = jax.random.normal(kw, (Cb, Cb), jnp.float32) * 0.1
    bb = jax.random.normal(kb, (Cb,), jnp.float32) * 0.1

    xh_bf = xh.astype(jnp.bfloat16)
    xl_bf = xl.astype(jnp.bfloat16)
    o_bf = topdown_pair(xh_bf, xl_bf, wb.astype(jnp.bfloat16),
                        bb.astype(jnp.bfloat16))
    o_bf = jax.block_until_ready(o_bf)
    ref_bf = _ref_pair(xh_bf.astype(jnp.float32), xl_bf.astype(jnp.float32),
                       wb.astype(jnp.bfloat16).astype(jnp.float32),
                       bb.astype(jnp.bfloat16).astype(jnp.float32))
    np.testing.assert_allclose(np.asarray(o_bf.astype(jnp.float32)),
                               np.asarray(ref_bf), rtol=5e-2, atol=1e-1)

    print("KERNEL_OK")
</pallas_src>

<mosaic_0001>
module attributes {stable_mosaic.version = 11 : i64} {
  func.func @_td_kernel(%arg0: i32, %arg1: i32, %arg2: memref<1x8x8x4xf32, #tpu.memory_space<vmem>>, %arg3: memref<1x8x2x8x8xf32, #tpu.memory_space<vmem>>, %arg4: memref<4x8xf32, #tpu.memory_space<vmem>>, %arg5: memref<1x8xf32, #tpu.memory_space<vmem>>, %arg6: memref<1x8x2x8x8xf32, #tpu.memory_space<vmem>>) attributes {dimension_semantics = [#tpu.dimension_semantics<parallel>, #tpu.dimension_semantics<parallel>], iteration_bounds = array<i64: 2, 1>, scalar_prefetch = 0 : i64, scratch_operands = 0 : i64, tpu.core_type = #tpu.core_type<tc>, window_params = [{transform_indices = @transform_0, window_bounds = array<i64: 1, 8, 8, 4>}, {transform_indices = @transform_1, window_bounds = array<i64: 1, 8, 2, 8, 8>}, {pipeline_mode = #tpu.pipeline_mode<synchronous>, transform_indices = @transform_2, window_bounds = array<i64: 4, 8>}, {pipeline_mode = #tpu.pipeline_mode<synchronous>, transform_indices = @transform_3, window_bounds = array<i64: 1, 8>}, {transform_indices = @transform_4, window_bounds = array<i64: 1, 8, 2, 8, 8>}]} {
    %c0 = arith.constant 0 : index
    %c0_0 = arith.constant 0 : index
    %c0_1 = arith.constant 0 : index
    %c0_2 = arith.constant 0 : index
    %0 = vector.load %arg2[%c0, %c0_0, %c0_1, %c0_2] : memref<1x8x8x4xf32, #tpu.memory_space<vmem>>, vector<1x8x8x4xf32>
    %1 = vector.shape_cast %0 : vector<1x8x8x4xf32> to vector<8x8x4xf32>
    %2 = vector.shape_cast %1 : vector<8x8x4xf32> to vector<64x4xf32>
    %c0_3 = arith.constant 0 : index
    %c0_4 = arith.constant 0 : index
    %3 = vector.load %arg4[%c0_3, %c0_4] : memref<4x8xf32, #tpu.memory_space<vmem>>, vector<4x8xf32>
    %cst = arith.constant dense<0.000000e+00> : vector<64x8xf32>
    %4 = tpu.matmul %2, %3, %cst {dimension_numbers = #tpu.dot_dimension_numbers<[1], [0], [0], [1], [0, 0, 1, 1], [], []>} : vector<64x4xf32>, vector<4x8xf32>, vector<64x8xf32> -> vector<64x8xf32>
    %c0_5 = arith.constant 0 : index
    %c0_6 = arith.constant 0 : index
    %5 = vector.load %arg5[%c0_5, %c0_6] : memref<1x8xf32, #tpu.memory_space<vmem>>, vector<1x8xf32>
    %6 = vector.broadcast %5 : vector<1x8xf32> to vector<64x8xf32>
    %7 = arith.addf %4, %6 : vector<64x8xf32>
    %8 = vector.shape_cast %7 : vector<64x8xf32> to vector<8x1x8x8xf32>
    %c0_7 = arith.constant 0 : index
    %c0_8 = arith.constant 0 : index
    %c0_9 = arith.constant 0 : index
    %c0_10 = arith.constant 0 : index
    %c0_11 = arith.constant 0 : index
    %9 = vector.load %arg3[%c0_7, %c0_8, %c0_9, %c0_10, %c0_11] : memref<1x8x2x8x8xf32, #tpu.memory_space<vmem>>, vector<1x8x2x8x8xf32>
    %10 = vector.shape_cast %9 : vector<1x8x2x8x8xf32> to vector<8x2x8x8xf32>
    %11 = vector.broadcast %8 : vector<8x1x8x8xf32> to vector<8x2x8x8xf32>
    %12 = arith.addf %10, %11 : vector<8x2x8x8xf32>
    %c0_12 = arith.constant 0 : index
    %c0_13 = arith.constant 0 : index
    %c0_14 = arith.constant 0 : index
    %c0_15 = arith.constant 0 : index
    %c0_16 = arith.constant 0 : index
    %13 = vector.load %arg6[%c0_12, %c0_13, %c0_14, %c0_15, %c0_16] : memref<1x8x2x8x8xf32, #tpu.memory_space<vmem>>, vector<1x8x2x8x8xf32>
    %14 = vector.shape_cast %13 : vector<1x8x2x8x8xf32> to vector<8x2x8x8xf32>
    %15 = vector.shape_cast %12 : vector<8x2x8x8xf32> to vector<1x8x2x8x8xf32>
    tpu.vector_store %arg6[%c0_12, %c0_13, %c0_14, %c0_15, %c0_16], %15 {strides = array<i32>} : memref<1x8x2x8x8xf32, #tpu.memory_space<vmem>>, vector<1x8x2x8x8xf32>,
    return
  }
  func.func @transform_0(%arg0: i32, %arg1: i32) -> (i32, i32, i32, i32) {
    %c0_i32 = arith.constant 0 : i32
    %c0_i32_0 = arith.constant 0 : i32
    %c0_i32_1 = arith.constant 0 : i32
    return %arg0, %arg1, %c0_i32, %c0_i32_0 : i32, i32, i32, i32
  }
  func.func @transform_1(%arg0: i32, %arg1: i32) -> (i32, i32, i32, i32, i32) {
    %c0_i32 = arith.constant 0 : i32
    %c0_i32_0 = arith.constant 0 : i32
    %c0_i32_1 = arith.constant 0 : i32
    %c0_i32_2 = arith.constant 0 : i32
    return %arg0, %arg1, %c0_i32, %c0_i32_0, %c0_i32_1 : i32, i32, i32, i32, i32
  }
  func.func @transform_2(%arg0: i32, %arg1: i32) -> (i32, i32) {
    %c0_i32 = arith.constant 0 : i32
    %c0_i32_0 = arith.constant 0 : i32
    %c0_i32_1 = arith.constant 0 : i32
    return %c0_i32, %c0_i32_0 : i32, i32
  }
  func.func @transform_3(%arg0: i32, %arg1: i32) -> (i32, i32) {
    %c0_i32 = arith.constant 0 : i32
    %c0_i32_0 = arith.constant 0 : i32
    %c0_i32_1 = arith.constant 0 : i32
    return %c0_i32, %c0_i32_0 : i32, i32
  }
  func.func @transform_4(%arg0: i32, %arg1: i32) -> (i32, i32, i32, i32, i32) {
    %c0_i32 = arith.constant 0 : i32
    %c0_i32_0 = arith.constant 0 : i32
    %c0_i32_1 = arith.constant 0 : i32
    %c0_i32_2 = arith.constant 0 : i32
    return %arg0, %arg1, %c0_i32, %c0_i32_0, %c0_i32_1 : i32, i32, i32, i32, i32
  }
}

</mosaic_0001>

<llo_original>
// kernel: _topdown_pair_pallas.1
$region0: #{_topdown_pair_pallas.1}
  #allocation0 [shape = 'u32[]', space=smem, size = 0x4, offset = 0x4, fixed_abs, tag = 'smem constant byte address 0x4 - core index']
  #allocation1 [shape = 'u32[144,128]{1,0:T(1,128)}', space=vmem, size = 0x12000, scoped, tag = 'internal scratch']
  %s0 = inlined_call_operand.vmem [shape: f32[2,8,8,4], index: 0, kind: input, shape index: {}]
  %s1 = inlined_call_operand.vmem [shape: f32[2,8,2,8,8], index: 1, kind: input, shape index: {}]
  %s2 = inlined_call_operand.vmem [shape: f32[4,8], index: 2, kind: input, shape index: {}]
  %s3 = inlined_call_operand.vmem [shape: f32[1,8], index: 3, kind: input, shape index: {}]
  %s4 = inlined_call_operand.vmem [shape: f32[2,8,2,8,8], index: 4, kind: output, shape index: {}]
  %s5 = sld [smem:[#allocation0]]
  $region49: #{_topdown_pair_pallas.1} parent=0
    _
  %s7 = ssub.s32 1, %s5
  %s8 = scalar_select 0, %s7, %s5
  loop: start=0, step=1, limit=4
  $region2: #{_topdown_pair_pallas.1} parent=0 // loop_pre_header
    _
  $region3: #{_topdown_pair_pallas.1} parent=0 // loop_header
    %s10 = sphi 0, %s14
    %p11 = scmp.ge.s32.totalorder %s10, 4
    %s17 = sphi 0, %s29
    %s18 = sphi 0, %s25
    %s19 = sphi 0, %s17
    %s20 = sphi 0, %s18
    %s21 = sphi 0, %s19
    %s22 = sphi 0, %s20
    %s34 = sphi 0, %s36
    %s37 = sphi 0, %s34
    %s38 = sphi 0, %s37
    %s54 = sphi 0, %s38
    %s62 = sphi 0, %s64
    %s65 = sphi 0, %s62
    %s66 = sphi 0, %s65
    %s82 = sphi 0, %s66
    %s86 = sphi 0, %s86
    %s88 = sphi 0, %s86
    %s89 = sphi 0, %s88
    %s103 = sphi 0, %s89
    %s107 = sphi 0, %s107
    %s109 = sphi 0, %s107
    %s110 = sphi 0, %s109
    %s124 = sphi 0, %s110
    %s132 = sphi 0, %s134
    %s135 = sphi 0, %s132
    %s136 = sphi 0, %s135
    %s152 = sphi 0, %s136
  $region4: #{_topdown_pair_pallas.1} parent=0 // loop_header_branch
    %13 = sbr.rel (%p11) target = $region8
  $region5: #{_topdown_pair_pallas.1} parent=0 // loop_body
    %s15 = ssub.s32 %s10, 1
    %s16 = ssub.s32 %s10, 2
    %s23 = sadd.s32 1, %s18
    %p24 = scmp.ge.s32.totalorder %s23, 1
    %s25 = scalar_select %p24, 0, %s23
    %s26 = sadd.s32 1, %s17
    %s27 = scalar_select %p24, %s26, %s17
    %p28 = scmp.ge.s32.totalorder %s27, 2
    %s29 = scalar_select %p28, 0, %s27
    %s30 = ssub.s32 %s17, %s29
    %s31 = ssub.s32 %s18, %s25
    %s32 = sor.u32 %s30, %s31
    %p33 = scmp.eq.s32.totalorder %s32, 0
    %s35 = sadd.s32 %s34, 1
    %s36 = scalar_select %p33, %s34, %s35
    %p39 = pneg %p33
    %p40 = scmp.eq.s32.totalorder %s10, 1
    %p41 = por %p39, %p40
    %p42 = scmp.ne.s32.totalorder %s34, %s37
    %p43 = scmp.eq.s32.totalorder %s10, 0
    %p44 = por %p42, %p43
    %p45 = scmp.ne.s32.totalorder %s34, %s37
    %p46 = scmp.eq.s32.totalorder %s15, 1
    %p47 = por %p45, %p46
    %p48 = scmp.ne.s32.totalorder %s37, %s38
    %p49 = scmp.eq.s32.totalorder %s15, 0
    %p50 = por %p48, %p49
    %p51 = scmp.ne.s32.totalorder %s37, %s38
    %p52 = scmp.eq.s32.totalorder %s16, 1
    %p53 = por %p51, %p52
    %p55 = scmp.ne.s32.totalorder %s38, %s54
    %p56 = scmp.eq.s32.totalorder %s16, 0
    %p57 = por %p55, %p56
    %s58 = ssub.s32 %s17, %s29
    %s59 = ssub.s32 %s18, %s25
    %s60 = sor.u32 %s58, %s59
    %p61 = scmp.eq.s32.totalorder %s60, 0
    %s63 = sadd.s32 %s62, 1
    %s64 = scalar_select %p61, %s62, %s63
    %p67 = pneg %p61
    %p68 = scmp.eq.s32.totalorder %s10, 1
    %p69 = por %p67, %p68
    %p70 = scmp.ne.s32.totalorder %s62, %s65
    %p71 = scmp.eq.s32.totalorder %s10, 0
    %p72 = por %p70, %p71
    %p73 = scmp.ne.s32.totalorder %s62, %s65
    %p74 = scmp.eq.s32.totalorder %s15, 1
    %p75 = por %p73, %p74
    %p76 = scmp.ne.s32.totalorder %s65, %s66
    %p77 = scmp.eq.s32.totalorder %s15, 0
    %p78 = por %p76, %p77
    %p79 = scmp.ne.s32.totalorder %s65, %s66
    %p80 = scmp.eq.s32.totalorder %s16, 1
    %p81 = por %p79, %p80
    %p83 = scmp.ne.s32.totalorder %s66, %s82
    %p84 = scmp.eq.s32.totalorder %s16, 0
    %p85 = por %p83, %p84
    %s87 = sadd.s32 %s86, 1
    %p90 = scmp.eq.s32.totalorder %s10, 1
    %p91 = scmp.ne.s32.totalorder %s86, %s88
    %p92 = scmp.eq.s32.totalorder %s10, 0
    %p93 = por %p91, %p92
    %p94 = scmp.ne.s32.totalorder %s86, %s88
    %p95 = scmp.eq.s32.totalorder %s15, 1
    %p96 = por %p94, %p95
    %p97 = scmp.ne.s32.totalorder %s88, %s89
    %p98 = scmp.eq.s32.totalorder %s15, 0
    %p99 = por %p97, %p98
    %p100 = scmp.ne.s32.totalorder %s88, %s89
    %p101 = scmp.eq.s32.totalorder %s16, 1
    %p102 = por %p100, %p101
    %p104 = scmp.ne.s32.totalorder %s89, %s103
    %p105 = scmp.eq.s32.totalorder %s16, 0
    %p106 = por %p104, %p105
    %s108 = sadd.s32 %s107, 1
    %p111 = scmp.eq.s32.totalorder %s10, 1
    %p112 = scmp.ne.s32.totalorder %s107, %s109
    %p113 = scmp.eq.s32.totalorder %s10, 0
    %p114 = por %p112, %p113
    %p115 = scmp.ne.s32.totalorder %s107, %s109
    %p116 = scmp.eq.s32.totalorder %s15, 1
    %p117 = por %p115, %p116
    %p118 = scmp.ne.s32.totalorder %s109, %s110
    %p119 = scmp.eq.s32.totalorder %s15, 0
    %p120 = por %p118, %p119
    %p121 = scmp.ne.s32.totalorder %s109, %s110
    %p122 = scmp.eq.s32.totalorder %s16, 1
    %p123 = por %p121, %p122
    %p125 = scmp.ne.s32.totalorder %s110, %s124
    %p126 = scmp.eq.s32.totalorder %s16, 0
    %p127 = por %p125, %p126
    %s128 = ssub.s32 %s17, %s29
    %s129 = ssub.s32 %s18, %s25
    %s130 = sor.u32 %s128, %s129
    %p131 = scmp.eq.s32.totalorder %s130, 0
    %s133 = sadd.s32 %s132, 1
    %s134 = scalar_select %p131, %s132, %s133
    %p137 = pneg %p131
    %p138 = scmp.eq.s32.totalorder %s10, 1
    %p139 = por %p137, %p138
    %p140 = scmp.ne.s32.totalorder %s132, %s135
    %p141 = scmp.eq.s32.totalorder %s10, 0
    %p142 = por %p140, %p141
    %p143 = scmp.ne.s32.totalorder %s132, %s135
    %p144 = scmp.eq.s32.totalorder %s15, 1
    %p145 = por %p143, %p144
    %p146 = scmp.ne.s32.totalorder %s135, %s136
    %p147 = scmp.eq.s32.totalorder %s15, 0
    %p148 = por %p146, %p147
    %p149 = scmp.ne.s32.totalorder %s135, %s136
    %p150 = scmp.eq.s32.totalorder %s16, 1
    %p151 = por %p149, %p150
    %p153 = scmp.ne.s32.totalorder %s136, %s152
    %p154 = scmp.eq.s32.totalorder %s16, 0
    %p155 = por %p153, %p154
    %p156 = scmp.le.s32.totalorder 1, %s10
    %p157 = scmp.lt.s32.totalorder %s10, 3
    %p158 = pnand %p156, %p157
    %p159 = pneg %p158
    // Predicated region
    $region9: #{_topdown_pair_pallas.1} parent=5 // pred_check
      _
    $region10: #{_topdown_pair_pallas.1} parent=5 // pred_check_branch
      %161 = sbr.rel (%p158) target = $region12
    $region11: #{_topdown_pair_pallas.1} parent=5 // pred_region
      %s162 = ssub.s32 %s10, 1
      // Predicated region
      $region13: #{_topdown_pair_pallas.1} parent=11 // pred_check
        %p163 = pneg %p99
      $region14: #{_topdown_pair_pallas.1} parent=11 // pred_check_branch
        %165 = sbr.rel (%p163) target = $region16
      $region15: #{_topdown_pair_pallas.1} parent=11 // pred_region
        _
      $region16: #{_topdown_pair_pallas.1} parent=11 // pred_fallthru
        _
      // Predicated region
      $region17: #{_topdown_pair_pallas.1} parent=11 // pred_check
        %p166 = pneg %p120
      $region18: #{_topdown_pair_pallas.1} parent=11 // pred_check_branch
        %168 = sbr.rel (%p166) target = $region20
      $region19: #{_topdown_pair_pallas.1} parent=11 // pred_region
        _
      $region20: #{_topdown_pair_pallas.1} parent=11 // pred_fallthru
        _
    $region12: #{_topdown_pair_pallas.1} parent=5 // pred_fallthru
      _
    %p169 = scmp.lt.s32.totalorder %s10, 2
    // Predicated region
    $region21: #{_topdown_pair_pallas.1} parent=5 // pred_check
      %p170 = pneg %p169
    $region22: #{_topdown_pair_pallas.1} parent=5 // pred_check_branch
      %172 = sbr.rel (%p170) target = $region24
    $region23: #{_topdown_pair_pallas.1} parent=5 // pred_region
      // Predicated region
      $region25: #{_topdown_pair_pallas.1} parent=23 // pred_check
        %p173 = pneg %p44
      $region26: #{_topdown_pair_pallas.1} parent=23 // pred_check_branch
        %175 = sbr.rel (%p173) target = $region28
      $region27: #{_topdown_pair_pallas.1} parent=23 // pred_region
        %s176 = smul.u32 8, %s18
        %p177 = scmp.lt.s32.totalorder %s17, 1
        %s178 = scalar_select %p177, %s17, 1
        %p179 = scmp.lt.s32.totalorder %s176, 7
        %s180 = scalar_select %p179, %s176, 7
        %s181 = smul.addr %s178, 8
        %s182 = sadd.s32 %s180, %s181
        %s183 = smul.addr %s182, 8
        %s184 = scalar_lea.vmem %s0, %s183
        %s185 = smul.u32 8, %s18
      $region28: #{_topdown_pair_pallas.1} parent=23 // pred_fallthru
        _
      // Predicated region
      $region29: #{_topdown_pair_pallas.1} parent=23 // pred_check
        %p186 = pneg %p72
      $region30: #{_topdown_pair_pallas.1} parent=23 // pred_check_branch
        %188 = sbr.rel (%p186) target = $region32
      $region31: #{_topdown_pair_pallas.1} parent=23 // pred_region
        %s189 = smul.u32 8, %s18
        %p190 = scmp.lt.s32.totalorder %s17, 1
        %s191 = scalar_select %p190, %s17, 1
        %p192 = scmp.lt.s32.totalorder %s189, 7
        %s193 = scalar_select %p192, %s189, 7
        %s194 = smul.addr %s193, 2
        %s195 = smul.addr %s191, 16
        %s196 = sadd.s32 %s194, %s195
        %s197 = smul.addr %s196, 8
        %s198 = scalar_lea.vmem %s1, %s197
        %s199 = smul.u32 8, %s18
      $region32: #{_topdown_pair_pallas.1} parent=23 // pred_fallthru
        _
    $region24: #{_topdown_pair_pallas.1} parent=5 // pred_fallthru
      _
    %p200 = scmp.le.s32.totalorder 1, %s10
    %p201 = scmp.lt.s32.totalorder %s10, 3
    %p202 = pnand %p200, %p201
    %p203 = pneg %p202
    // Predicated region
    $region33: #{_topdown_pair_pallas.1} parent=5 // pred_check
      _
    $region34: #{_topdown_pair_pallas.1} parent=5 // pred_check_branch
      %205 = sbr.rel (%p202) target = $region36
    $region35: #{_topdown_pair_pallas.1} parent=5 // pred_region
      %s206 = ssub.s32 %s10, 1
      %s207 = smul.u32 8, %s20
      %p208 = scmp.lt.s32.totalorder %s19, 1
      %s209 = scalar_select %p208, %s19, 1
      %p210 = scmp.lt.s32.totalorder %s207, 7
      %s211 = scalar_select %p210, %s207, 7
      %s212 = smul.addr %s209, 8
      %s213 = sadd.s32 %s211, %s212
      %s214 = smul.addr %s213, 8
      %s215 = scalar_lea.vmem %s0, %s214
      %p216 = pneg %p50
      %p217 = pneg %p47
      %s218 = smul.u32 8, %s20
      %p219 = scmp.lt.s32.totalorder %s19, 1
      %s220 = scalar_select %p219, %s19, 1
      %p221 = scmp.lt.s32.totalorder %s218, 7
      %s222 = scalar_select %p221, %s218, 7
      %s223 = smul.addr %s222, 2
      %s224 = smul.addr %s220, 16
      %s225 = sadd.s32 %s223, %s224
      %s226 = smul.addr %s225, 8
      %s227 = scalar_lea.vmem %s1, %s226
      %p228 = pneg %p78
      %p229 = pneg %p75
      %p230 = pneg %p99
      %p231 = pneg %p96
      %p232 = pneg %p120
      %p233 = pneg %p117
      %p234 = pneg %p148
      %p235 = pneg %p145
      %s236 = smul.u32 8, %s20
      %p237 = scmp.lt.s32.totalorder %s19, 1
      %s238 = scalar_select %p237, %s19, 1
      %p239 = scmp.lt.s32.totalorder %s236, 7
      %s240 = scalar_select %p239, %s236, 7
      %s241 = smul.addr %s240, 2
      %s242 = smul.addr %s238, 16
      %s243 = sadd.s32 %s241, %s242
      %s244 = smul.addr %s243, 8
      %s245 = scalar_lea.vmem %s4, %s244
      %s246 = smul.u32 8, %s20
      %p247 = scmp.lt.s32.totalorder %s19, 1
      %s248 = scalar_select %p247, %s19, 1
      %p249 = scmp.lt.s32.totalorder %s246, 7
      %s250 = scalar_select %p249, %s246, 7
      %s251 = smul.addr %s248, 8
      %s252 = sadd.s32 %s250, %s251
      %s253 = smul.addr %s252, 8
      %s254 = scalar_lea.vmem %s0, %s253
      %s255 = smul.u32 8, %s20
      %s256 = smul.u32 8, %s20
      %p257 = scmp.lt.s32.totalorder %s19, 1
      %s258 = scalar_select %p257, %s19, 1
      %p259 = scmp.lt.s32.totalorder %s256, 7
      %s260 = scalar_select %p259, %s256, 7
      %s261 = smul.addr %s260, 2
      %s262 = smul.addr %s258, 16
      %s263 = sadd.s32 %s261, %s262
      %s264 = smul.addr %s263, 8
      %s265 = scalar_lea.vmem %s1, %s264
      %s266 = smul.u32 8, %s20
      %s267 = smul.u32 8, %s20
      %p268 = scmp.lt.s32.totalorder %s19, 1
      %s269 = scalar_select %p268, %s19, 1
      %p270 = scmp.lt.s32.totalorder %s267, 7
      %s271 = scalar_select %p270, %s267, 7
      %s272 = smul.addr %s271, 2
      %s273 = smul.addr %s269, 16
      %s274 = sadd.s32 %s272, %s273
      %s275 = smul.addr %s274, 8
      %s276 = scalar_lea.vmem %s4, %s275
      %s277 = smul.u32 8, %s20
      %v278 = vld [vmem:[%s254] sm:$0xff]
      %v279 = vld [vmem:[%s254 + $0x8] sm:$0xff]
      %v280 = vld [vmem:[%s254 + $0x10] sm:$0xff]
      %v281 = vld [vmem:[%s254 + $0x18] sm:$0xff]
      %v282 = vld [vmem:[%s254 + $0x20] sm:$0xff]
      %v283 = vld [vmem:[%s254 + $0x28] sm:$0xff]
      %v284 = vld [vmem:[%s254 + $0x30] sm:$0xff]
      %v285 = vld [vmem:[%s254 + $0x38] sm:$0xff]
      %v286 = vld [vmem:[%s2] sm:$0xf]
      %v287 = vld [vmem:[%s3] sm:$0x1]
      %v289 = vlaneseq
      %v290 = vshrl.u32 %v289, 7
      %v291 = vsub.s32 0, %v290
      %v292 = vrot.slane %v287, %v291
      %vm294 = vcmask 31744
      %v296 = vsel %vm294, %v278, 0
      %v299 = vsel %vm294, %v279, 0
      %v302 = vsel %vm294, %v280, 0
      %v305 = vsel %vm294, %v281, 0
      %v308 = vsel %vm294, %v282, 0
      %v311 = vsel %vm294, %v283, 0
      %v314 = vsel %vm294, %v284, 0
      %v317 = vsel %vm294, %v285, 0
      %vm319 = vcmask 1043456
      %v321 = vsel %vm319, %v286, 0
      %323 = vmatprep.subr.mxu0 0.0
      %324 = vmatpush1.msra.mxu0 %v321
      %325 = vmatprep.subr.mxu0 0.0
      %326 = vmatpush1.msra.mxu0 0.0
      %327 = vmatprep.subr.mxu0 0.0
      %328 = vmatpush1.msra.mxu0 0.0
      %329 = vmatprep.subr.mxu0 0.0
      %330 = vmatpush1.msra.mxu0 0.0
      %331 = vmatprep.subr.mxu0 0.0
      %332 = vmatpush1.msra.mxu0 0.0
      %333 = vmatprep.subr.mxu0 0.0
      %334 = vmatpush1.msra.mxu0 0.0
      %335 = vmatprep.subr.mxu0 0.0
      %336 = vmatpush1.msra.mxu0 0.0
      %337 = vmatprep.subr.mxu0 0.0
      %338 = vmatpush1.msra.mxu0 0.0
      %339 = vmatprep.subr.mxu0 0.0
      %340 = vmatpush1.msra.mxu0 0.0
      %341 = vmatprep.subr.mxu0 0.0
      %342 = vmatpush1.msra.mxu0 0.0
      %343 = vmatprep.subr.mxu0 0.0
      %344 = vmatpush1.msra.mxu0 0.0
      %345 = vmatprep.subr.mxu0 0.0
      %346 = vmatpush1.msra.mxu0 0.0
      %347 = vmatprep.subr.mxu0 0.0
      %348 = vmatpush1.msra.mxu0 0.0
      %349 = vmatprep.subr.mxu0 0.0
      %350 = vmatpush1.msra.mxu0 0.0
      %351 = vmatprep.subr.mxu0 0.0
      %352 = vmatpush1.msra.mxu0 0.0
      %353 = vmatprep.subr.mxu0 0.0
      %354 = vmatpush1.msra.mxu0 0.0
      %355 = vmatprep.subr.mxu0 0.0
      %356 = vmatpush1.msra.mxu0 0.0
      %357 = vmatprep.subr.mxu0 0.0
      %358 = vmatpush1.msra.mxu0 0.0
      %359 = vmatprep.subr.mxu0 0.0
      %360 = vmatpush1.msra.mxu0 0.0
      %361 = vmatprep.subr.mxu0 0.0
      %362 = vmatpush1.msra.mxu0 0.0
      %363 = vmatprep.subr.mxu0 0.0
      %364 = vmatpush1.msra.mxu0 0.0
      %365 = vmatprep.subr.mxu0 0.0
      %366 = vmatpush1.msra.mxu0 0.0
      %367 = vmatprep.subr.mxu0 0.0
      %368 = vmatpush1.msra.mxu0 0.0
      %369 = vmatprep.subr.mxu0 0.0
      %370 = vmatpush1.msra.mxu0 0.0
      %371 = vmatprep.subr.mxu0 0.0
      %372 = vmatpush1.msra.mxu0 0.0
      %373 = vmatprep.subr.mxu0 0.0
      %374 = vmatpush1.msra.mxu0 0.0
      %375 = vmatprep.subr.mxu0 0.0
      %376 = vmatpush1.msra.mxu0 0.0
      %377 = vmatprep.subr.mxu0 0.0
      %378 = vmatpush1.msra.mxu0 0.0
      %379 = vmatprep.subr.mxu0 0.0
      %380 = vmatpush1.msra.mxu0 0.0
      %381 = vmatprep.subr.mxu0 0.0
      %382 = vmatpush1.msra.mxu0 0.0
      %383 = vmatprep.subr.mxu0 0.0
      %384 = vmatpush1.msra.mxu0 0.0
      %385 = vmatprep.subr.mxu0 0.0
      %386 = vmatpush1.msra.mxu0 0.0
      %387 = vmatprep.mubr.f32.mxu0 0.0
      %388 = vmatmul.mubr.f32.gmra.mrb[0].mxu0 %v296
      %v389 = vpop.f32.mrb[0].mxu0
      %v390 = vadd.f32 %v292, %v389
      %v391 = vpop.f32.mrb[0].mxu0
      %392 = vmatprep.mubr.f32.mxu0 0.0
      %393 = vmatmul.mubr.f32.gmra.mrb[0].mxu0 %v299
      %v394 = vpop.f32.mrb[0].mxu0
      %v395 = vadd.f32 %v292, %v394
      %v396 = vpop.f32.mrb[0].mxu0
      %397 = vmatprep.mubr.f32.mxu0 0.0
      %398 = vmatmul.mubr.f32.gmra.mrb[0].mxu0 %v302
      %v399 = vpop.f32.mrb[0].mxu0
      %v400 = vadd.f32 %v292, %v399
      %v401 = vpop.f32.mrb[0].mxu0
      %402 = vmatprep.mubr.f32.mxu0 0.0
      %403 = vmatmul.mubr.f32.gmra.mrb[0].mxu0 %v305
      %v404 = vpop.f32.mrb[0].mxu0
      %v405 = vadd.f32 %v292, %v404
      %v406 = vpop.f32.mrb[0].mxu0
      %407 = vmatprep.mubr.f32.mxu0 0.0
      %408 = vmatmul.mubr.f32.gmra.mrb[0].mxu0 %v308
      %v409 = vpop.f32.mrb[0].mxu0
      %v410 = vadd.f32 %v292, %v409
      %v411 = vpop.f32.mrb[0].mxu0
      %412 = vmatprep.mubr.f32.mxu0 0.0
      %413 = vmatmul.mubr.f32.gmra.mrb[0].mxu0 %v311
      %v414 = vpop.f32.mrb[0].mxu0
      %v415 = vadd.f32 %v292, %v414
      %v416 = vpop.f32.mrb[0].mxu0
      %417 = vmatprep.mubr.f32.mxu0 0.0
      %418 = vmatmul.mubr.f32.gmra.mrb[0].mxu0 %v314
      %v419 = vpop.f32.mrb[0].mxu0
      %v420 = vadd.f32 %v292, %v419
      %v421 = vpop.f32.mrb[0].mxu0
      %422 = vmatprep.mubr.f32.mxu0 0.0
      %423 = vmatmul.mubr.f32.gmra.mrb[0].mxu0 %v317
      %v424 = vpop.f32.mrb[0].mxu0
      %v425 = vadd.f32 %v292, %v424
      %v426 = vpop.f32.mrb[0].mxu0
      %427 = vdwg.mxu0
      %v428 = vld [vmem:[%s265] sm:$0xff]
      %v429 = vld [vmem:[%s265 + $0x8] sm:$0xff]
      %v430 = vld [vmem:[%s265 + $0x10] sm:$0xff]
      %v431 = vld [vmem:[%s265 + $0x18] sm:$0xff]
      %v432 = vld [vmem:[%s265 + $0x20] sm:$0xff]
      %v433 = vld [vmem:[%s265 + $0x28] sm:$0xff]
      %v434 = vld [vmem:[%s265 + $0x30] sm:$0xff]
      %v435 = vld [vmem:[%s265 + $0x38] sm:$0xff]
      %v436 = vld [vmem:[%s265 + $0x40] sm:$0xff]
      %v437 = vld [vmem:[%s265 + $0x48] sm:$0xff]
      %v438 = vld [vmem:[%s265 + $0x50] sm:$0xff]
      %v439 = vld [vmem:[%s265 + $0x58] sm:$0xff]
      %v440 = vld [vmem:[%s265 + $0x60] sm:$0xff]
      %v441 = vld [vmem:[%s265 + $0x68] sm:$0xff]
      %v442 = vld [vmem:[%s265 + $0x70] sm:$0xff]
      %v443 = vld [vmem:[%s265 + $0x78] sm:$0xff]
      %v444 = vadd.f32 %v428, %v390
      %v445 = vadd.f32 %v429, %v390
      %v446 = vadd.f32 %v430, %v395
      %v447 = vadd.f32 %v431, %v395
      %v448 = vadd.f32 %v432, %v400
      %v449 = vadd.f32 %v433, %v400
      %v450 = vadd.f32 %v434, %v405
      %v451 = vadd.f32 %v435, %v405
      %v452 = vadd.f32 %v436, %v410
      %v453 = vadd.f32 %v437, %v410
      %v454 = vadd.f32 %v438, %v415
      %v455 = vadd.f32 %v439, %v415
      %v456 = vadd.f32 %v440, %v420
      %v457 = vadd.f32 %v441, %v420
      %v458 = vadd.f32 %v442, %v425
      %v459 = vadd.f32 %v443, %v425
      %vm460 = vcmask 64512
      %461 = vst.msk [vmem:[%s276] sm:$0xff] %vm460, %v444
      %462 = vst.msk [vmem:[%s276 + $0x8] sm:$0xff] %vm460, %v445
      %463 = vst.msk [vmem:[%s276 + $0x10] sm:$0xff] %vm460, %v446
      %464 = vst.msk [vmem:[%s276 + $0x18] sm:$0xff] %vm460, %v447
      %465 = vst.msk [vmem:[%s276 + $0x20] sm:$0xff] %vm460, %v448
      %466 = vst.msk [vmem:[%s276 + $0x28] sm:$0xff] %vm460, %v449
      %467 = vst.msk [vmem:[%s276 + $0x30] sm:$0xff] %vm460, %v450
      %468 = vst.msk [vmem:[%s276 + $0x38] sm:$0xff] %vm460, %v451
      %469 = vst.msk [vmem:[%s276 + $0x40] sm:$0xff] %vm460, %v452
      %470 = vst.msk [vmem:[%s276 + $0x48] sm:$0xff] %vm460, %v453
      %471 = vst.msk [vmem:[%s276 + $0x50] sm:$0xff] %vm460, %v454
      %472 = vst.msk [vmem:[%s276 + $0x58] sm:$0xff] %vm460, %v455
      %473 = vst.msk [vmem:[%s276 + $0x60] sm:$0xff] %vm460, %v456
      %474 = vst.msk [vmem:[%s276 + $0x68] sm:$0xff] %vm460, %v457
      %475 = vst.msk [vmem:[%s276 + $0x70] sm:$0xff] %vm460, %v458
      %476 = vst.msk [vmem:[%s276 + $0x78] sm:$0xff] %vm460, %v459
      %s477 = smul.u32 8, %s20
      %p478 = scmp.lt.s32.totalorder %s19, 1
      %s479 = scalar_select %p478, %s19, 1
      %p480 = scmp.lt.s32.totalorder %s477, 7
      %s481 = scalar_select %p480, %s477, 7
      %s482 = smul.addr %s481, 2
      %s483 = smul.addr %s479, 16
      %s484 = sadd.s32 %s482, %s483
      %s485 = smul.addr %s484, 8
      %s486 = scalar_lea.vmem %s4, %s485
      // Predicated region
      $region37: #{_topdown_pair_pallas.1} parent=35 // pred_check
        %p487 = pneg %p145
      $region38: #{_topdown_pair_pallas.1} parent=35 // pred_check_branch
        %489 = sbr.rel (%p487) target = $region40
      $region39: #{_topdown_pair_pallas.1} parent=35 // pred_region
        %s490 = smul.u32 8, %s20
      $region40: #{_topdown_pair_pallas.1} parent=35 // pred_fallthru
        _
    $region36: #{_topdown_pair_pallas.1} parent=5 // pred_fallthru
      _
    %p491 = scmp.le.s32.totalorder 2, %s10
    // Predicated region
    $region41: #{_topdown_pair_pallas.1} parent=5 // pred_check
      %p492 = pneg %p491
    $region42: #{_topdown_pair_pallas.1} parent=5 // pred_check_branch
      %494 = sbr.rel (%p492) target = $region44
    $region43: #{_topdown_pair_pallas.1} parent=5 // pred_region
      %s495 = ssub.s32 %s10, 2
      // Predicated region
      $region45: #{_topdown_pair_pallas.1} parent=43 // pred_check
        %p496 = pneg %p151
      $region46: #{_topdown_pair_pallas.1} parent=43 // pred_check_branch
        %498 = sbr.rel (%p496) target = $region48
      $region47: #{_topdown_pair_pallas.1} parent=43 // pred_region
        %s499 = smul.u32 8, %s22
        %p500 = scmp.lt.s32.totalorder %s21, 1
        %s501 = scalar_select %p500, %s21, 1
        %p502 = scmp.lt.s32.totalorder %s499, 7
        %s503 = scalar_select %p502, %s499, 7
        %s504 = smul.addr %s503, 2
        %s505 = smul.addr %s501, 16
        %s506 = sadd.s32 %s504, %s505
        %s507 = smul.addr %s506, 8
        %s508 = scalar_lea.vmem %s4, %s507
      $region48: #{_topdown_pair_pallas.1} parent=43 // pred_fallthru
        _
    $region44: #{_topdown_pair_pallas.1} parent=5 // pred_fallthru
      _
  $region6: #{_topdown_pair_pallas.1} parent=0 // loop_footer
    %s14 = sadd.s32 1, %s10
  $region7: #{_topdown_pair_pallas.1} parent=0 // loop_footer_branch
    %9 = sbr.rel target = $region3
  $region8: #{_topdown_pair_pallas.1} parent=0 // loop_exit
    _

</llo_original>
